<compile_context>
chip_gen: v7x
topology: tpu7x:2x2x1
jax: 0.10.0
libtpu: 0.0.40
codegen_flags: <defaults>
</compile_context>

<pallas_src>
import jax
import jax.numpy as jnp
from jax.experimental import pallas as pl
from jax.experimental.pallas import tpu as pltpu


def _base_model_kernel(batch_ref, label_ref, mask_ref,
                       soft_ref, hard_ref, mlabel_ref):
    # pred = forward(preprocess(batch)) -> identity passthrough in BaseModel.
    x = batch_ref[...].astype(jnp.float32)                      # (TB, C)

    # --- softmax over last dim (predict with soft_pred=True) -----------------
    row_max = jnp.max(x, axis=-1, keepdims=True)                # (TB, 1)
    e = jnp.exp(x - row_max)                                    # EUP
    denom = jnp.sum(e, axis=-1, keepdims=True)                  # (TB, 1)
    soft_ref[...] = (e / denom).astype(soft_ref.dtype)          # exact divide (EUP slack)

    # --- argmax over dim=1 (predict with soft_pred=False) --------------------
    # First maximal index (torch semantics); NaN treated as max (first NaN wins).
    # f32 index math is exact for C < 2^24 (asserted in the wrapper).
    col_idx = jax.lax.broadcasted_iota(jnp.int32, x.shape, 1).astype(jnp.float32)
    is_max = (x == row_max) | jnp.isnan(x)
    sentinel = jnp.float32(x.shape[-1])                         # > any valid index
    hard = jnp.min(jnp.where(is_max, col_idx, sentinel), axis=-1)   # (TB,) f32
    hard_ref[...] = hard.reshape(1, 1, -1).astype(jnp.int32)        # lane-dense (1,1,TB)

    # --- masked label: label[~mask] = -1 (epoch_step / predict) --------------
    mlabel_ref[...] = jnp.where(mask_ref[...] != 0, label_ref[...], jnp.int32(-1))


def _round_down(x, m):
    return max(m, (x // m) * m)


def _pick_tile(B, C, *, target_block_bytes=4 << 20,
               vmem_budget_bytes=24 << 20, min_steps=4):
    """Rows per batch tile:
       - ~target_block_bytes per (TB, C) f32 block (HBM-bound: big blocks
         amortize the ~0.35 us per-grid-step overhead),
       - double-buffered input + f32 soft output kept under vmem_budget_bytes,
       - (for large B) at least `min_steps` grid steps so both v7x TCs stay fed,
       - aligned to 128 rows when possible, else 8 (sublane)."""
    bytes_per_row = 4 * C
    tb = max(8, target_block_bytes // bytes_per_row)
    tb = min(tb, max(8, vmem_budget_bytes // (4 * bytes_per_row)))
    tb = min(tb, max(8, pl.cdiv(B, min_steps)))
    if tb >= 128:
        tb = _round_down(tb, 128)
    else:
        tb = _round_down(tb, 8)
    return int(tb)


def base_model_predict(batch, label, mask, soft_dtype=jnp.float32):
    """batch: (B, C) float; label: (B,) int; mask: (B,) bool/int.

    Returns:
      soft   : softmax(batch, axis=-1)        (B, C) soft_dtype
      hard   : argmax(batch, axis=1)          (B,)   int32
      mlabel : label with ~mask positions=-1  (B,)   int32
    """
    B, C = batch.shape
    assert C < (1 << 24), "f32-index argmax is exact only for C < 2^24"

    TB = _pick_tile(B, C)
    n_blocks = pl.cdiv(B, TB)
    B_pad = n_blocks * TB
    pad = B_pad - B

    batch_f32 = batch.astype(jnp.float32)
    if pad:
        batch_f32 = jnp.pad(batch_f32, ((0, pad), (0, 0)))
    label_i32 = jnp.pad(label.astype(jnp.int32), (0, pad)).reshape(n_blocks, 1, TB)
    mask_i32 = jnp.pad(mask.astype(jnp.int32), (0, pad)).reshape(n_blocks, 1, TB)

    out_shapes = (
        jax.ShapeDtypeStruct((B_pad, C), soft_dtype),       # softmax(pred, -1)
        jax.ShapeDtypeStruct((n_blocks, 1, TB), jnp.int32),  # argmax(pred, 1)
        jax.ShapeDtypeStruct((n_blocks, 1, TB), jnp.int32),  # masked label
    )

    # VMEM footprint: double-buffered batch + soft tiles, plus the small i32 rows.
    block_bytes = TB * C * 4
    footprint = 4 * block_bytes + 8 * TB * 4
    vmem_limit = int(min(32 << 20, max(16 << 20, 2 * footprint)))

    soft, hard_rows, mlabel_rows = pl.pallas_call(
        _base_model_kernel,
        out_shape=out_shapes,
        grid_spec=pltpu.PrefetchScalarGridSpec(
            num_scalar_prefetch=0,
            grid=(n_blocks,),
            in_specs=[
                pl.BlockSpec((TB, C), lambda i: (i, 0)),     # batch tile
                pl.BlockSpec((1, 1, TB), lambda i: (i, 0, 0)),  # label row
                pl.BlockSpec((1, 1, TB), lambda i: (i, 0, 0)),  # mask row
            ],
            out_specs=[
                pl.BlockSpec((TB, C), lambda i: (i, 0)),        # soft pred tile
                pl.BlockSpec((1, 1, TB), lambda i: (i, 0, 0)),  # hard pred row
                pl.BlockSpec((1, 1, TB), lambda i: (i, 0, 0)),  # masked label row
            ],
        ),
        compiler_params=pltpu.CompilerParams(
            dimension_semantics=("parallel",),               # megacore on v7x
            vmem_limit_bytes=vmem_limit,
        ),
        cost_estimate=pl.CostEstimate(
            flops=6 * B_pad * C,
            transcendentals=B_pad * C,
            bytes_accessed=4 * (2 * B_pad * C + 4 * B_pad),
        ),
    )(batch_f32, label_i32, mask_i32)

    soft = soft[:B] if pad else soft
    hard = hard_rows.reshape(B_pad)[:B]
    mlabel = mlabel_rows.reshape(B_pad)[:B]
    return soft, hard, mlabel


if __name__ == "__main__":
    key = jax.random.PRNGKey(0)

    # (384, 128): multi-step grid (4 tiles), lane-dense C, no padding.
    # (300, 64) : non-divisible B -> exercises the pad-to-tile path.
    # (8, 32)   : tiny sub-(8,128) shapes -> single full-array block.
    for (B, C) in ((384, 128), (300, 64), (8, 32)):
        kb, kl, km = jax.random.split(jax.random.fold_in(key, B * 1000 + C), 3)
        batch = jax.random.normal(kb, (B, C), dtype=jnp.float32)
        label = jax.random.randint(kl, (B,), 0, C, dtype=jnp.int32)
        mask = jax.random.uniform(km, (B,)) > 0.5

        soft, hard, mlabel = base_model_predict(batch, label, mask)
        jax.block_until_ready((soft, hard, mlabel))

        # sanity check against pure-JAX reference
        ref_soft = jax.nn.softmax(batch, axis=-1)
        ref_hard = jnp.argmax(batch, axis=1).astype(jnp.int32)
        ref_mlabel = jnp.where(mask, label, -1).astype(jnp.int32)
        assert jnp.allclose(soft, ref_soft, atol=1e-6, rtol=1e-5), (B, C)
        assert jnp.array_equal(hard, ref_hard), (B, C)
        assert jnp.array_equal(mlabel, ref_mlabel), (B, C)

    print("KERNEL_OK")
</pallas_src>

<mosaic_0001>
module attributes {stable_mosaic.version = 11 : i64} {
  func.func @_base_model_kernel(%arg0: i32, %arg1: memref<96x128xf32, #tpu.memory_space<vmem>>, %arg2: memref<1x1x96xi32, #tpu.memory_space<vmem>>, %arg3: memref<1x1x96xi32, #tpu.memory_space<vmem>>, %arg4: memref<96x128xf32, #tpu.memory_space<vmem>>, %arg5: memref<1x1x96xi32, #tpu.memory_space<vmem>>, %arg6: memref<1x1x96xi32, #tpu.memory_space<vmem>>) attributes {dimension_semantics = [#tpu.dimension_semantics<parallel>], iteration_bounds = array<i64: 4>, scalar_prefetch = 0 : i64, scratch_operands = 0 : i64, tpu.core_type = #tpu.core_type<tc>, window_params = [{transform_indices = @transform_0, window_bounds = array<i64: 96, 128>}, {transform_indices = @transform_1, window_bounds = array<i64: 1, 1, 96>}, {transform_indices = @transform_2, window_bounds = array<i64: 1, 1, 96>}, {transform_indices = @transform_3, window_bounds = array<i64: 96, 128>}, {transform_indices = @transform_4, window_bounds = array<i64: 1, 1, 96>}, {transform_indices = @transform_5, window_bounds = array<i64: 1, 1, 96>}]} {
    %c0 = arith.constant 0 : index
    %c0_0 = arith.constant 0 : index
    %0 = vector.load %arg1[%c0, %c0_0] : memref<96x128xf32, #tpu.memory_space<vmem>>, vector<96x128xf32>
    %cst = arith.constant dense<0xFF800000> : vector<96xf32>
    %1 = vector.multi_reduction <maximumf>, %0, %cst [1] : vector<96x128xf32> to vector<96xf32>
    %2 = vector.shape_cast %1 : vector<96xf32> to vector<96x1xf32>
    %3 = vector.broadcast %2 : vector<96x1xf32> to vector<96x128xf32>
    %4 = arith.subf %0, %3 : vector<96x128xf32>
    %5 = math.exp %4 : vector<96x128xf32>
    %cst_1 = arith.constant dense<0.000000e+00> : vector<96xf32>
    %6 = vector.multi_reduction <add>, %5, %cst_1 [1] : vector<96x128xf32> to vector<96xf32>
    %7 = vector.shape_cast %6 : vector<96xf32> to vector<96x1xf32>
    %8 = vector.broadcast %7 : vector<96x1xf32> to vector<96x128xf32>
    %9 = arith.divf %5, %8 : vector<96x128xf32>
    %c0_2 = arith.constant 0 : index
    %c0_3 = arith.constant 0 : index
    %10 = vector.load %arg4[%c0_2, %c0_3] : memref<96x128xf32, #tpu.memory_space<vmem>>, vector<96x128xf32>
    tpu.vector_store %arg4[%c0_2, %c0_3], %9 {strides = array<i32>} : memref<96x128xf32, #tpu.memory_space<vmem>>, vector<96x128xf32>,
    %11 = tpu.iota {dimensions = array<i32: 1>} : vector<96x128xi32>
    %12 = arith.sitofp %11 : vector<96x128xi32> to vector<96x128xf32>
    %13 = vector.broadcast %2 : vector<96x1xf32> to vector<96x128xf32>
    %14 = arith.cmpf oeq, %0, %13 : vector<96x128xf32>
    %15 = arith.cmpf one, %0, %0 : vector<96x128xf32>
    %16 = arith.ori %14, %15 : vector<96x128xi1>
    %cst_4 = arith.constant 1.280000e+02 : f32
    %17 = vector.broadcast %cst_4 : f32 to vector<96x128xf32>
    %18 = arith.select %16, %12, %17 : vector<96x128xi1>, vector<96x128xf32>
    %cst_5 = arith.constant dense<0x7F800000> : vector<96xf32>
    %19 = vector.multi_reduction <minimumf>, %18, %cst_5 [1] : vector<96x128xf32> to vector<96xf32>
    %20 = vector.shape_cast %19 : vector<96xf32> to vector<1x1x96xf32>
    %21 = arith.fptosi %20 : vector<1x1x96xf32> to vector<1x1x96xi32>
    %c0_6 = arith.constant 0 : index
    %c0_7 = arith.constant 0 : index
    %c0_8 = arith.constant 0 : index
    %22 = vector.load %arg5[%c0_6, %c0_7, %c0_8] : memref<1x1x96xi32, #tpu.memory_space<vmem>>, vector<1x1x96xi32>
    tpu.vector_store %arg5[%c0_6, %c0_7, %c0_8], %21 {strides = array<i32>} : memref<1x1x96xi32, #tpu.memory_space<vmem>>, vector<1x1x96xi32>,
    %c0_9 = arith.constant 0 : index
    %c0_10 = arith.constant 0 : index
    %c0_11 = arith.constant 0 : index
    %23 = vector.load %arg3[%c0_9, %c0_10, %c0_11] : memref<1x1x96xi32, #tpu.memory_space<vmem>>, vector<1x1x96xi32>
    %c0_i32 = arith.constant 0 : i32
    %24 = vector.broadcast %c0_i32 : i32 to vector<1x1x96xi32>
    %25 = arith.cmpi ne, %23, %24 : vector<1x1x96xi32>
    %c0_12 = arith.constant 0 : index
    %c0_13 = arith.constant 0 : index
    %c0_14 = arith.constant 0 : index
    %26 = vector.load %arg2[%c0_12, %c0_13, %c0_14] : memref<1x1x96xi32, #tpu.memory_space<vmem>>, vector<1x1x96xi32>
    %c-1_i32 = arith.constant -1 : i32
    %27 = vector.broadcast %c-1_i32 : i32 to vector<1x1x96xi32>
    %28 = arith.select %25, %26, %27 : vector<1x1x96xi1>, vector<1x1x96xi32>
    %c0_15 = arith.constant 0 : index
    %c0_16 = arith.constant 0 : index
    %c0_17 = arith.constant 0 : index
    %29 = vector.load %arg6[%c0_15, %c0_16, %c0_17] : memref<1x1x96xi32, #tpu.memory_space<vmem>>, vector<1x1x96xi32>
    tpu.vector_store %arg6[%c0_15, %c0_16, %c0_17], %28 {strides = array<i32>} : memref<1x1x96xi32, #tpu.memory_space<vmem>>, vector<1x1x96xi32>,
    return
  }
  func.func @transform_0(%arg0: i32) -> (i32, i32) {
    %c0_i32 = arith.constant 0 : i32
    %c0_i32_0 = arith.constant 0 : i32
    return %arg0, %c0_i32 : i32, i32
  }
  func.func @transform_1(%arg0: i32) -> (i32, i32, i32) {
    %c0_i32 = arith.constant 0 : i32
    %c0_i32_0 = arith.constant 0 : i32
    %c0_i32_1 = arith.constant 0 : i32
    return %arg0, %c0_i32, %c0_i32_0 : i32, i32, i32
  }
  func.func @transform_2(%arg0: i32) -> (i32, i32, i32) {
    %c0_i32 = arith.constant 0 : i32
    %c0_i32_0 = arith.constant 0 : i32
    %c0_i32_1 = arith.constant 0 : i32
    return %arg0, %c0_i32, %c0_i32_0 : i32, i32, i32
  }
  func.func @transform_3(%arg0: i32) -> (i32, i32) {
    %c0_i32 = arith.constant 0 : i32
    %c0_i32_0 = arith.constant 0 : i32
    return %arg0, %c0_i32 : i32, i32
  }
  func.func @transform_4(%arg0: i32) -> (i32, i32, i32) {
    %c0_i32 = arith.constant 0 : i32
    %c0_i32_0 = arith.constant 0 : i32
    %c0_i32_1 = arith.constant 0 : i32
    return %arg0, %c0_i32, %c0_i32_0 : i32, i32, i32
  }
  func.func @transform_5(%arg0: i32) -> (i32, i32, i32) {
    %c0_i32 = arith.constant 0 : i32
    %c0_i32_0 = arith.constant 0 : i32
    %c0_i32_1 = arith.constant 0 : i32
    return %arg0, %c0_i32, %c0_i32_0 : i32, i32, i32
  }
}

</mosaic_0001>

<llo_original>
// kernel: tpu_custom_call.1
$region0: #{tpu_custom_call.1}
  #allocation0 [shape = 'u32[]', space=smem, size = 0x4, offset = 0x4, fixed_abs, tag = 'smem constant byte address 0x4 - core index']
  #allocation1 [shape = 'u32[144,128]{1,0:T(1,128)}', space=vmem, size = 0x12000, scoped, tag = 'internal scratch']
  %s0 = inlined_call_operand.hbm [shape: f32[384,128], index: 0, kind: input, shape index: {}]
  %s1 = inlined_call_operand.hbm [shape: s32[4,1,96], index: 1, kind: input, shape index: {}]
  %s2 = inlined_call_operand.vmem [shape: s32[4,1,96], index: 2, kind: input, shape index: {}]
  %s3 = inlined_call_operand.hbm [shape: f32[384,128], index: 3, kind: output, shape index: {0}]
  %s4 = inlined_call_operand.hbm [shape: s32[4,1,96], index: 4, kind: output, shape index: {1}]
  %s5 = inlined_call_operand.hbm [shape: s32[4,1,96], index: 5, kind: output, shape index: {2}]
  %6 = xla_tuple %s3, %s4, %s5
  %s7 = sld [smem:[#allocation0]]
  $region69: #{tpu_custom_call.1} parent=0
    _
  %s9 = ssub.s32 1, %s7
  %s10 = scalar_select 0, %s9, %s7
  $region1: #{tpu_custom_call.1} parent=0
    #allocation2 [shape = 'u8[98304]{0}', space=vmem, size = 0x18000, scoped, tag = 'input window, operand 0']
    #allocation3 [shape = 's32[2]{0}', space=sflag, size = 0x8, scoped, tag = 'scoped memory for tpu_custom_call.1']
    #allocation4 [shape = 's32[2]{0}', space=sflag, size = 0x8, scoped, tag = 'scoped memory for tpu_custom_call.1']
    #allocation5 [shape = 'u8[1024]{0}', space=vmem, size = 0x400, scoped, tag = 'input window, operand 1']
    #allocation6 [shape = 's32[2]{0}', space=sflag, size = 0x8, scoped, tag = 'scoped memory for tpu_custom_call.1']
    #allocation7 [shape = 'u8[98304]{0}', space=vmem, size = 0x18000, scoped, tag = 'output window, operand 0']
    #allocation8 [shape = 'u8[1024]{0}', space=vmem, size = 0x400, scoped, tag = 'output window, operand 1']
    #allocation9 [shape = 's32[2]{0}', space=sflag, size = 0x8, scoped, tag = 'scoped memory for tpu_custom_call.1']
    #allocation10 [shape = 'u8[1024]{0}', space=vmem, size = 0x400, scoped, tag = 'output window, operand 2']
    %11 = vsyncpa [#allocation3], 0
    %s12 = scalar_lea.sflag [#allocation3], 1
    %13 = vsyncpa %s12, 0
    %14 = vsyncpa [#allocation6], 0
    %s15 = scalar_lea.sflag [#allocation6], 1
    %16 = vsyncpa %s15, 0
    %17 = vsyncpa [#allocation4], 0
    %s18 = scalar_lea.sflag [#allocation4], 1
    %19 = vsyncpa %s18, 0
    %20 = vsyncpa [#allocation9], 0
    %s21 = scalar_lea.sflag [#allocation9], 1
    %22 = vsyncpa %s21, 0
    loop: start=0, step=1, limit=6
    $region2: #{tpu_custom_call.1} parent=1 // loop_pre_header
      _
    $region3: #{tpu_custom_call.1} parent=1 // loop_header
      %s24 = sphi 0, %s28
      %p25 = scmp.ge.s32.totalorder %s24, 6
      %s34 = sphi 0, %s36
      %s37 = sphi 0, %s34
      %s38 = sphi 0, %s37
      %s54 = sphi 0, %s38
      %s60 = sphi 0, %s62
      %s63 = sphi 0, %s60
      %s64 = sphi 0, %s63
      %s80 = sphi 0, %s64
      %s86 = sphi 0, %s88
      %s89 = sphi 0, %s86
      %s90 = sphi 0, %s89
      %s106 = sphi 0, %s90
      %s112 = sphi 0, %s114
      %s115 = sphi 0, %s112
      %s116 = sphi 0, %s115
      %s132 = sphi 0, %s116
      %s138 = sphi 0, %s140
      %s141 = sphi 0, %s138
      %s142 = sphi 0, %s141
      %s158 = sphi 0, %s142
      %s164 = sphi 0, %s166
      %s167 = sphi 0, %s164
      %s168 = sphi 0, %s167
      %s184 = sphi 0, %s168
    $region4: #{tpu_custom_call.1} parent=1 // loop_header_branch
      %27 = sbr.rel (%p25) target = $region8
    $region5: #{tpu_custom_call.1} parent=1 // loop_body
      %s29 = ssub.s32 %s24, 1
      %s30 = ssub.s32 %s24, 2
      %s31 = sadd.s32 %s24, 1
      %s32 = ssub.s32 %s24, %s31
      %p33 = scmp.eq.s32.totalorder %s32, 0
      %s35 = sadd.s32 %s34, 1
      %s36 = scalar_select %p33, %s34, %s35
      %p39 = pneg %p33
      %p40 = scmp.eq.s32.totalorder %s24, 3
      %p41 = por %p39, %p40
      %p42 = scmp.ne.s32.totalorder %s34, %s37
      %p43 = scmp.eq.s32.totalorder %s24, 0
      %p44 = por %p42, %p43
      %p45 = scmp.ne.s32.totalorder %s34, %s37
      %p46 = scmp.eq.s32.totalorder %s29, 3
      %p47 = por %p45, %p46
      %p48 = scmp.ne.s32.totalorder %s37, %s38
      %p49 = scmp.eq.s32.totalorder %s29, 0
      %p50 = por %p48, %p49
      %p51 = scmp.ne.s32.totalorder %s37, %s38
      %p52 = scmp.eq.s32.totalorder %s30, 3
      %p53 = por %p51, %p52
      %p55 = scmp.ne.s32.totalorder %s38, %s54
      %p56 = scmp.eq.s32.totalorder %s30, 0
      %p57 = por %p55, %p56
      %s58 = ssub.s32 %s24, %s31
      %p59 = scmp.eq.s32.totalorder %s58, 0
      %s61 = sadd.s32 %s60, 1
      %s62 = scalar_select %p59, %s60, %s61
      %p65 = pneg %p59
      %p66 = scmp.eq.s32.totalorder %s24, 3
      %p67 = por %p65, %p66
      %p68 = scmp.ne.s32.totalorder %s60, %s63
      %p69 = scmp.eq.s32.totalorder %s24, 0
      %p70 = por %p68, %p69
      %p71 = scmp.ne.s32.totalorder %s60, %s63
      %p72 = scmp.eq.s32.totalorder %s29, 3
      %p73 = por %p71, %p72
      %p74 = scmp.ne.s32.totalorder %s63, %s64
      %p75 = scmp.eq.s32.totalorder %s29, 0
      %p76 = por %p74, %p75
      %p77 = scmp.ne.s32.totalorder %s63, %s64
      %p78 = scmp.eq.s32.totalorder %s30, 3
      %p79 = por %p77, %p78
      %p81 = scmp.ne.s32.totalorder %s64, %s80
      %p82 = scmp.eq.s32.totalorder %s30, 0
      %p83 = por %p81, %p82
      %s84 = ssub.s32 %s24, %s31
      %p85 = scmp.eq.s32.totalorder %s84, 0
      %s87 = sadd.s32 %s86, 1
      %s88 = scalar_select %p85, %s86, %s87
      %p91 = pneg %p85
      %p92 = scmp.eq.s32.totalorder %s24, 3
      %p93 = por %p91, %p92
      %p94 = scmp.ne.s32.totalorder %s86, %s89
      %p95 = scmp.eq.s32.totalorder %s24, 0
      %p96 = por %p94, %p95
      %p97 = scmp.ne.s32.totalorder %s86, %s89
      %p98 = scmp.eq.s32.totalorder %s29, 3
      %p99 = por %p97, %p98
      %p100 = scmp.ne.s32.totalorder %s89, %s90
      %p101 = scmp.eq.s32.totalorder %s29, 0
      %p102 = por %p100, %p101
      %p103 = scmp.ne.s32.totalorder %s89, %s90
      %p104 = scmp.eq.s32.totalorder %s30, 3
      %p105 = por %p103, %p104
      %p107 = scmp.ne.s32.totalorder %s90, %s106
      %p108 = scmp.eq.s32.totalorder %s30, 0
      %p109 = por %p107, %p108
      %s110 = ssub.s32 %s24, %s31
      %p111 = scmp.eq.s32.totalorder %s110, 0
      %s113 = sadd.s32 %s112, 1
      %s114 = scalar_select %p111, %s112, %s113
      %p117 = pneg %p111
      %p118 = scmp.eq.s32.totalorder %s24, 3
      %p119 = por %p117, %p118
      %p120 = scmp.ne.s32.totalorder %s112, %s115
      %p121 = scmp.eq.s32.totalorder %s24, 0
      %p122 = por %p120, %p121
      %p123 = scmp.ne.s32.totalorder %s112, %s115
      %p124 = scmp.eq.s32.totalorder %s29, 3
      %p125 = por %p123, %p124
      %p126 = scmp.ne.s32.totalorder %s115, %s116
      %p127 = scmp.eq.s32.totalorder %s29, 0
      %p128 = por %p126, %p127
      %p129 = scmp.ne.s32.totalorder %s115, %s116
      %p130 = scmp.eq.s32.totalorder %s30, 3
      %p131 = por %p129, %p130
      %p133 = scmp.ne.s32.totalorder %s116, %s132
      %p134 = scmp.eq.s32.totalorder %s30, 0
      %p135 = por %p133, %p134
      %s136 = ssub.s32 %s24, %s31
      %p137 = scmp.eq.s32.totalorder %s136, 0
      %s139 = sadd.s32 %s138, 1
      %s140 = scalar_select %p137, %s138, %s139
      %p143 = pneg %p137
      %p144 = scmp.eq.s32.totalorder %s24, 3
      %p145 = por %p143, %p144
      %p146 = scmp.ne.s32.totalorder %s138, %s141
      %p147 = scmp.eq.s32.totalorder %s24, 0
      %p148 = por %p146, %p147
      %p149 = scmp.ne.s32.totalorder %s138, %s141
      %p150 = scmp.eq.s32.totalorder %s29, 3
      %p151 = por %p149, %p150
      %p152 = scmp.ne.s32.totalorder %s141, %s142
      %p153 = scmp.eq.s32.totalorder %s29, 0
      %p154 = por %p152, %p153
      %p155 = scmp.ne.s32.totalorder %s141, %s142
      %p156 = scmp.eq.s32.totalorder %s30, 3
      %p157 = por %p155, %p156
      %p159 = scmp.ne.s32.totalorder %s142, %s158
      %p160 = scmp.eq.s32.totalorder %s30, 0
      %p161 = por %p159, %p160
      %s162 = ssub.s32 %s24, %s31
      %p163 = scmp.eq.s32.totalorder %s162, 0
      %s165 = sadd.s32 %s164, 1
      %s166 = scalar_select %p163, %s164, %s165
      %p169 = pneg %p163
      %p170 = scmp.eq.s32.totalorder %s24, 3
      %p171 = por %p169, %p170
      %p172 = scmp.ne.s32.totalorder %s164, %s167
      %p173 = scmp.eq.s32.totalorder %s24, 0
      %p174 = por %p172, %p173
      %p175 = scmp.ne.s32.totalorder %s164, %s167
      %p176 = scmp.eq.s32.totalorder %s29, 3
      %p177 = por %p175, %p176
      %p178 = scmp.ne.s32.totalorder %s167, %s168
      %p179 = scmp.eq.s32.totalorder %s29, 0
      %p180 = por %p178, %p179
      %p181 = scmp.ne.s32.totalorder %s167, %s168
      %p182 = scmp.eq.s32.totalorder %s30, 3
      %p183 = por %p181, %p182
      %p185 = scmp.ne.s32.totalorder %s168, %s184
      %p186 = scmp.eq.s32.totalorder %s30, 0
      %p187 = por %p185, %p186
      %p188 = scmp.le.s32.totalorder 1, %s24
      %p189 = scmp.lt.s32.totalorder %s24, 5
      %p190 = pnand %p188, %p189
      %p191 = pneg %p190
      // Predicated region
      $region9: #{tpu_custom_call.1} parent=5 // pred_check
        _
      $region10: #{tpu_custom_call.1} parent=5 // pred_check_branch
        %193 = sbr.rel (%p190) target = $region12
      $region11: #{tpu_custom_call.1} parent=5 // pred_region
        %s194 = ssub.s32 %s24, 1
      $region12: #{tpu_custom_call.1} parent=5 // pred_fallthru
        _
      %p195 = scmp.lt.s32.totalorder %s24, 4
      // Predicated region
      $region13: #{tpu_custom_call.1} parent=5 // pred_check
        %p196 = pneg %p195
      $region14: #{tpu_custom_call.1} parent=5 // pred_check_branch
        %198 = sbr.rel (%p196) target = $region16
      $region15: #{tpu_custom_call.1} parent=5 // pred_region
        // Predicated region
        $region17: #{tpu_custom_call.1} parent=15 // pred_check
          %p199 = pneg %p44
        $region18: #{tpu_custom_call.1} parent=15 // pred_check_branch
          %201 = sbr.rel (%p199) target = $region20
        $region19: #{tpu_custom_call.1} parent=15 // pred_region
          %s202 = sand.u32 %s34, 1
          %s203 = scalar_lea.sflag [#allocation3], %s202
          %s204 = sand.u32 %s34, 1
          %s205 = smul.addr %s204, 96
          %s206 = scalar_lea.vmem [#allocation2], %s205
          %s207 = smul.u32 12, %s24
          %s209 = ssub.s32 1536, 1536
          %210 = vsyncadd %s203, %s209
          %s211 = smul.addr %s207, 128
          %s212 = scalar_lea.hbm %s0, %s211
          %s213 = sshll.u32 %s206, 4
          %s214 = int_to_ptr.vmem [resolvable:$true] %s213
          %219 = dma.hbm_to_vmem [thread:$0]  %s212, 1536, %s214, %s203, 128, 128, 8
        $region20: #{tpu_custom_call.1} parent=15 // pred_fallthru
          _
        // Predicated region
        $region21: #{tpu_custom_call.1} parent=15 // pred_check
          %p220 = pneg %p70
        $region22: #{tpu_custom_call.1} parent=15 // pred_check_branch
          %222 = sbr.rel (%p220) target = $region24
        $region23: #{tpu_custom_call.1} parent=15 // pred_region
          %s223 = sand.u32 %s60, 1
          %s224 = scalar_lea.sflag [#allocation6], %s223
          %s225 = sand.u32 %s60, 1
          %s226 = scalar_lea.vmem [#allocation5], %s225
          %s228 = ssub.s32 16, 16
          %229 = vsyncadd %s224, %s228
          %s230 = smul.addr %s24, 16
          %s231 = scalar_lea.hbm %s1, %s230
          %s233 = sshll.u32 %s226, 4
          %s234 = int_to_ptr.vmem [resolvable:$true] %s233
          %236 = dma.hbm_to_vmem [thread:$0]  %s231, 16, %s234, %s224
        $region24: #{tpu_custom_call.1} parent=15 // pred_fallthru
          _
        // Predicated region
        $region25: #{tpu_custom_call.1} parent=15 // pred_check
          %p237 = pneg %p96
        $region26: #{tpu_custom_call.1} parent=15 // pred_check_branch
          %239 = sbr.rel (%p237) target = $region28
        $region27: #{tpu_custom_call.1} parent=15 // pred_region
          %p240 = scmp.lt.s32.totalorder %s24, 3
          %s241 = scalar_select %p240, %s24, 3
          %s242 = scalar_lea.vmem %s2, %s241
        $region28: #{tpu_custom_call.1} parent=15 // pred_fallthru
          _
      $region16: #{tpu_custom_call.1} parent=5 // pred_fallthru
        _
      %p243 = scmp.le.s32.totalorder 1, %s24
      %p244 = scmp.lt.s32.totalorder %s24, 5
      %p245 = pnand %p243, %p244
      %p246 = pneg %p245
      // Predicated region
      $region29: #{tpu_custom_call.1} parent=5 // pred_check
        _
      $region30: #{tpu_custom_call.1} parent=5 // pred_check_branch
        %248 = sbr.rel (%p245) target = $region32
      $region31: #{tpu_custom_call.1} parent=5 // pred_region
        %s249 = ssub.s32 %s24, 1
        %s250 = sand.u32 %s37, 1
        %s251 = scalar_lea.sflag [#allocation3], %s250
        %s252 = sand.u32 %s37, 1
        %s253 = smul.addr %s252, 96
        %s254 = scalar_lea.vmem [#allocation2], %s253
        // Predicated region
        $region33: #{tpu_custom_call.1} parent=31 // pred_check
          %p255 = pneg %p50
        $region34: #{tpu_custom_call.1} parent=31 // pred_check_branch
          %257 = sbr.rel (%p255) target = $region36
        $region35: #{tpu_custom_call.1} parent=31 // pred_region
          %258 = dma.done %s251, 1536
        $region36: #{tpu_custom_call.1} parent=31 // pred_fallthru
          _
        %s259 = sand.u32 %s63, 1
        %s260 = scalar_lea.sflag [#allocation6], %s259
        %s261 = sand.u32 %s63, 1
        %s262 = scalar_lea.vmem [#allocation5], %s261
        // Predicated region
        $region37: #{tpu_custom_call.1} parent=31 // pred_check
          %p263 = pneg %p76
        $region38: #{tpu_custom_call.1} parent=31 // pred_check_branch
          %265 = sbr.rel (%p263) target = $region40
        $region39: #{tpu_custom_call.1} parent=31 // pred_region
          %266 = dma.done %s260, 16
        $region40: #{tpu_custom_call.1} parent=31 // pred_fallthru
          _
        %s267 = sand.u32 %s37, 1
        %s268 = scalar_lea.sflag [#allocation3], %s267
        %s269 = sand.u32 %s37, 1
        %s270 = smul.addr %s269, 96
        %s271 = scalar_lea.vmem [#allocation2], %s270
        %p272 = pneg %p50
        %p273 = pneg %p47
        %s274 = sand.u32 %s63, 1
        %s275 = scalar_lea.sflag [#allocation6], %s274
        %s276 = sand.u32 %s63, 1
        %s277 = scalar_lea.vmem [#allocation5], %s276
        %p278 = pneg %p76
        %p279 = pneg %p73
        %p280 = scmp.lt.s32.totalorder %s29, 3
        %s281 = scalar_select %p280, %s29, 3
        %s282 = scalar_lea.vmem %s2, %s281
        %p283 = pneg %p102
        %p284 = pneg %p99
        %p285 = pneg %p128
        %p286 = pneg %p125
        %s287 = sand.u32 %s115, 1
        %s288 = scalar_lea.sflag [#allocation4], %s287
        %s289 = sand.u32 %s115, 1
        %s290 = smul.addr %s289, 96
        %s291 = scalar_lea.vmem [#allocation7], %s290
        %p292 = pneg %p154
        %p293 = pneg %p151
        %s294 = sand.u32 %s29, 1
        %s295 = scalar_lea.sflag [#allocation9], %s294
        %s296 = sand.u32 %s141, 1
        %s297 = scalar_lea.vmem [#allocation8], %s296
        %p298 = pneg %p180
        %p299 = pneg %p177
        %s300 = sand.u32 %s29, 1
        %s301 = scalar_lea.sflag [#allocation9], %s300
        %s302 = sand.u32 %s167, 1
        %s303 = scalar_lea.vmem [#allocation10], %s302
        %s304 = smul.u32 12, %s29
        %p305 = scmp.lt.s32.totalorder %s29, 3
        %s306 = scalar_select %p305, %s29, 3
        %s307 = scalar_lea.vmem %s2, %s306
        %s308 = smul.u32 12, %s29
        %v309 = vld [vmem:[%s254] sm:$0xff]
        %v310 = vld [vmem:[%s254 + $0x8] sm:$0xff]
        %v311 = vld [vmem:[%s254 + $0x10] sm:$0xff]
        %v312 = vld [vmem:[%s254 + $0x18] sm:$0xff]
        %v313 = vld [vmem:[%s254 + $0x20] sm:$0xff]
        %v314 = vld [vmem:[%s254 + $0x28] sm:$0xff]
        %v315 = vld [vmem:[%s254 + $0x30] sm:$0xff]
        %v316 = vld [vmem:[%s254 + $0x38] sm:$0xff]
        %v317 = vld [vmem:[%s254 + $0x40] sm:$0xff]
        %v318 = vld [vmem:[%s254 + $0x48] sm:$0xff]
        %v319 = vld [vmem:[%s254 + $0x50] sm:$0xff]
        %v320 = vld [vmem:[%s254 + $0x58] sm:$0xff]
        %321 = vmax.xlane.f32.xlu0 %v309
        %v322 = vpop.xlane.xlu0 %321
        %323 = vmax.xlane.f32.xlu0 %v310
        %v324 = vpop.xlane.xlu0 %323
        %325 = vmax.xlane.f32.xlu0 %v311
        %v326 = vpop.xlane.xlu0 %325
        %327 = vmax.xlane.f32.xlu0 %v312
        %v328 = vpop.xlane.xlu0 %327
        %329 = vmax.xlane.f32.xlu0 %v313
        %v330 = vpop.xlane.xlu0 %329
        %331 = vmax.xlane.f32.xlu0 %v314
        %v332 = vpop.xlane.xlu0 %331
        %333 = vmax.xlane.f32.xlu0 %v315
        %v334 = vpop.xlane.xlu0 %333
        %335 = vmax.xlane.f32.xlu0 %v316
        %v336 = vpop.xlane.xlu0 %335
        %337 = vmax.xlane.f32.xlu0 %v317
        %v338 = vpop.xlane.xlu0 %337
        %339 = vmax.xlane.f32.xlu0 %v318
        %v340 = vpop.xlane.xlu0 %339
        %341 = vmax.xlane.f32.xlu0 %v319
        %v342 = vpop.xlane.xlu0 %341
        %343 = vmax.xlane.f32.xlu0 %v320
        %v344 = vpop.xlane.xlu0 %343
        %v345 = vsub.f32 %v309, %v322
        %v346 = vsub.f32 %v310, %v324
        %v347 = vsub.f32 %v311, %v326
        %v348 = vsub.f32 %v312, %v328
        %v349 = vsub.f32 %v313, %v330
        %v350 = vsub.f32 %v314, %v332
        %v351 = vsub.f32 %v315, %v334
        %v352 = vsub.f32 %v316, %v336
        %v353 = vsub.f32 %v317, %v338
        %v354 = vsub.f32 %v318, %v340
        %v355 = vsub.f32 %v319, %v342
        %v356 = vsub.f32 %v320, %v344
        %v357 = vmul.f32 %v345, 1.442695
        %v358 = vpow.pop %v357
        %v359 = vmul.f32 %v346, 1.442695
        %v360 = vpow.pop %v359
        %v361 = vmul.f32 %v347, 1.442695
        %v362 = vpow.pop %v361
        %v363 = vmul.f32 %v348, 1.442695
        %v364 = vpow.pop %v363
        %v365 = vmul.f32 %v349, 1.442695
        %v366 = vpow.pop %v365
        %v367 = vmul.f32 %v350, 1.442695
        %v368 = vpow.pop %v367
        %v369 = vmul.f32 %v351, 1.442695
        %v370 = vpow.pop %v369
        %v371 = vmul.f32 %v352, 1.442695
        %v372 = vpow.pop %v371
        %v373 = vmul.f32 %v353, 1.442695
        %v374 = vpow.pop %v373
        %v375 = vmul.f32 %v354, 1.442695
        %v376 = vpow.pop %v375
        %v377 = vmul.f32 %v355, 1.442695
        %v378 = vpow.pop %v377
        %v379 = vmul.f32 %v356, 1.442695
        %v380 = vpow.pop %v379
        %381 = vadd.xlane.f32.xlu0 %v358
        %v382 = vpop.xlane.xlu0 %381
        %383 = vadd.xlane.f32.xlu0 %v360
        %v384 = vpop.xlane.xlu0 %383
        %385 = vadd.xlane.f32.xlu0 %v362
        %v386 = vpop.xlane.xlu0 %385
        %387 = vadd.xlane.f32.xlu0 %v364
        %v388 = vpop.xlane.xlu0 %387
        %389 = vadd.xlane.f32.xlu0 %v366
        %v390 = vpop.xlane.xlu0 %389
        %391 = vadd.xlane.f32.xlu0 %v368
        %v392 = vpop.xlane.xlu0 %391
        %393 = vadd.xlane.f32.xlu0 %v370
        %v394 = vpop.xlane.xlu0 %393
        %395 = vadd.xlane.f32.xlu0 %v372
        %v396 = vpop.xlane.xlu0 %395
        %397 = vadd.xlane.f32.xlu0 %v374
        %v398 = vpop.xlane.xlu0 %397
        %399 = vadd.xlane.f32.xlu0 %v376
        %v400 = vpop.xlane.xlu0 %399
        %401 = vadd.xlane.f32.xlu0 %v378
        %v402 = vpop.xlane.xlu0 %401
        %403 = vadd.xlane.f32.xlu0 %v380
        %v404 = vpop.xlane.xlu0 %403
        %v405 = vrcp.pop %v382
        %v406 = vmul.f32 %v358, %v405
        %v407 = vrcp.pop %v384
        %v408 = vmul.f32 %v360, %v407
        %v409 = vrcp.pop %v386
        %v410 = vmul.f32 %v362, %v409
        %v411 = vrcp.pop %v388
        %v412 = vmul.f32 %v364, %v411
        %v413 = vrcp.pop %v390
        %v414 = vmul.f32 %v366, %v413
        %v415 = vrcp.pop %v392
        %v416 = vmul.f32 %v368, %v415
        %v417 = vrcp.pop %v394
        %v418 = vmul.f32 %v370, %v417
        %v419 = vrcp.pop %v396
        %v420 = vmul.f32 %v372, %v419
        %v421 = vrcp.pop %v398
        %v422 = vmul.f32 %v374, %v421
        %v423 = vrcp.pop %v400
        %v424 = vmul.f32 %v376, %v423
        %v425 = vrcp.pop %v402
        %v426 = vmul.f32 %v378, %v425
        %v427 = vrcp.pop %v404
        %v428 = vmul.f32 %v380, %v427
        %429 = vst [vmem:[%s291] sm:$0xff] %v406
        %430 = vst [vmem:[%s291 + $0x8] sm:$0xff] %v408
        %431 = vst [vmem:[%s291 + $0x10] sm:$0xff] %v410
        %432 = vst [vmem:[%s291 + $0x18] sm:$0xff] %v412
        %433 = vst [vmem:[%s291 + $0x20] sm:$0xff] %v414
        %434 = vst [vmem:[%s291 + $0x28] sm:$0xff] %v416
        %435 = vst [vmem:[%s291 + $0x30] sm:$0xff] %v418
        %436 = vst [vmem:[%s291 + $0x38] sm:$0xff] %v420
        %437 = vst [vmem:[%s291 + $0x40] sm:$0xff] %v422
        %438 = vst [vmem:[%s291 + $0x48] sm:$0xff] %v424
        %439 = vst [vmem:[%s291 + $0x50] sm:$0xff] %v426
        %440 = vst [vmem:[%s291 + $0x58] sm:$0xff] %v428
        %v441 = vlaneseq
        %v442 = vand.u32 %v441, 127
        %v443 = vcvt.s32.f32 %v442
        %vm444 = vcmp.eq.f32.partialorder %v309, %v322
        %vm445 = vcmp.eq.f32.partialorder %v310, %v324
        %vm446 = vcmp.eq.f32.partialorder %v311, %v326
        %vm447 = vcmp.eq.f32.partialorder %v312, %v328
        %vm448 = vcmp.eq.f32.partialorder %v313, %v330
        %vm449 = vcmp.eq.f32.partialorder %v314, %v332
        %vm450 = vcmp.eq.f32.partialorder %v315, %v334
        %vm451 = vcmp.eq.f32.partialorder %v316, %v336
        %vm452 = vcmp.eq.f32.partialorder %v317, %v338
        %vm453 = vcmp.eq.f32.partialorder %v318, %v340
        %vm454 = vcmp.eq.f32.partialorder %v319, %v342
        %vm455 = vcmp.eq.f32.partialorder %v320, %v344
        %vm456 = vcmp.ne.f32.partialorder %v309, %v309
        %vm457 = vcmp.ne.f32.partialorder %v310, %v310
        %vm458 = vcmp.ne.f32.partialorder %v311, %v311
        %vm459 = vcmp.ne.f32.partialorder %v312, %v312
        %vm460 = vcmp.ne.f32.partialorder %v313, %v313
        %vm461 = vcmp.ne.f32.partialorder %v314, %v314
        %vm462 = vcmp.ne.f32.partialorder %v315, %v315
        %vm463 = vcmp.ne.f32.partialorder %v316, %v316
        %vm464 = vcmp.ne.f32.partialorder %v317, %v317
        %vm465 = vcmp.ne.f32.partialorder %v318, %v318
        %vm466 = vcmp.ne.f32.partialorder %v319, %v319
        %vm467 = vcmp.ne.f32.partialorder %v320, %v320
        %vm468 = vmor %vm444, %vm456
        %vm469 = vmor %vm445, %vm457
        %vm470 = vmor %vm446, %vm458
        %vm471 = vmor %vm447, %vm459
        %vm472 = vmor %vm448, %vm460
        %vm473 = vmor %vm449, %vm461
        %vm474 = vmor %vm450, %vm462
        %vm475 = vmor %vm451, %vm463
        %vm476 = vmor %vm452, %vm464
        %vm477 = vmor %vm453, %vm465
        %vm478 = vmor %vm454, %vm466
        %vm479 = vmor %vm455, %vm467
        %v480 = vsel %vm468, %v443, 128.0
        %v481 = vsel %vm469, %v443, 128.0
        %v482 = vsel %vm470, %v443, 128.0
        %v483 = vsel %vm471, %v443, 128.0
        %v484 = vsel %vm472, %v443, 128.0
        %v485 = vsel %vm473, %v443, 128.0
        %v486 = vsel %vm474, %v443, 128.0
        %v487 = vsel %vm475, %v443, 128.0
        %v488 = vsel %vm476, %v443, 128.0
        %v489 = vsel %vm477, %v443, 128.0
        %v490 = vsel %vm478, %v443, 128.0
        %v491 = vsel %vm479, %v443, 128.0
        %492 = vmin.xlane.f32.xlu0 %v480
        %v493 = vpop.xlane.xlu0 %492
        %494 = vmin.xlane.f32.xlu0 %v481
        %v495 = vpop.xlane.xlu0 %494
        %496 = vmin.xlane.f32.xlu0 %v482
        %v497 = vpop.xlane.xlu0 %496
        %498 = vmin.xlane.f32.xlu0 %v483
        %v499 = vpop.xlane.xlu0 %498
        %500 = vmin.xlane.f32.xlu0 %v484
        %v501 = vpop.xlane.xlu0 %500
        %502 = vmin.xlane.f32.xlu0 %v485
        %v503 = vpop.xlane.xlu0 %502
        %504 = vmin.xlane.f32.xlu0 %v486
        %v505 = vpop.xlane.xlu0 %504
        %506 = vmin.xlane.f32.xlu0 %v487
        %v507 = vpop.xlane.xlu0 %506
        %508 = vmin.xlane.f32.xlu0 %v488
        %v509 = vpop.xlane.xlu0 %508
        %510 = vmin.xlane.f32.xlu0 %v489
        %v511 = vpop.xlane.xlu0 %510
        %512 = vmin.xlane.f32.xlu0 %v490
        %v513 = vpop.xlane.xlu0 %512
        %514 = vmin.xlane.f32.xlu0 %v491
        %v515 = vpop.xlane.xlu0 %514
        %v516 = vcvt.f32.s32.to.zero.pseudo %v493
        %v517 = vcvt.f32.s32.to.zero.pseudo %v495
        %v518 = vcvt.f32.s32.to.zero.pseudo %v497
        %v519 = vcvt.f32.s32.to.zero.pseudo %v499
        %v520 = vcvt.f32.s32.to.zero.pseudo %v501
        %v521 = vcvt.f32.s32.to.zero.pseudo %v503
        %v522 = vcvt.f32.s32.to.zero.pseudo %v505
        %v523 = vcvt.f32.s32.to.zero.pseudo %v507
        %v524 = vcvt.f32.s32.to.zero.pseudo %v509
        %v525 = vcvt.f32.s32.to.zero.pseudo %v511
        %v526 = vcvt.f32.s32.to.zero.pseudo %v513
        %v527 = vcvt.f32.s32.to.zero.pseudo %v515
        %v528 = vlaneseq
        %v529 = vshrl.u32 %v528, 7
        %v530 = vsub.s32 %v442, %v529
        %v531 = vrot.slane %v516, %v530
        %v532 = vadd.s32 %v442, 4294967288
        %v533 = vlaneseq
        %v534 = vshrl.u32 %v533, 7
        %v535 = vsub.s32 %v532, %v534
        %v536 = vrot.slane %v517, %v535
        %vm537 = vcmask 130112
        %v538 = vsel %vm537, %v536, %v531
        %v539 = vadd.s32 %v442, 4294967280
        %v540 = vlaneseq
        %v541 = vshrl.u32 %v540, 7
        %v542 = vsub.s32 %v539, %v541
        %v543 = vrot.slane %v518, %v542
        %vm544 = vcmask 195712
        %v545 = vsel %vm544, %v543, %v538
        %v546 = vadd.s32 %v442, 4294967272
        %v547 = vlaneseq
        %v548 = vshrl.u32 %v547, 7
        %v549 = vsub.s32 %v546, %v548
        %v550 = vrot.slane %v519, %v549
        %vm551 = vcmask 261312
        %v552 = vsel %vm551, %v550, %v545
        %v553 = vadd.s32 %v442, 4294967264
        %v554 = vlaneseq
        %v555 = vshrl.u32 %v554, 7
        %v556 = vsub.s32 %v553, %v555
        %v557 = vrot.slane %v520, %v556
        %vm558 = vcmask 326912
        %v559 = vsel %vm558, %v557, %v552
        %v560 = vadd.s32 %v442, 4294967256
        %v561 = vlaneseq
        %v562 = vshrl.u32 %v561, 7
        %v563 = vsub.s32 %v560, %v562
        %v564 = vrot.slane %v521, %v563
        %vm565 = vcmask 392512
        %v566 = vsel %vm565, %v564, %v559
        %v567 = vadd.s32 %v442, 4294967248
        %v568 = vlaneseq
        %v569 = vshrl.u32 %v568, 7
        %v570 = vsub.s32 %v567, %v569
        %v571 = vrot.slane %v522, %v570
        %vm572 = vcmask 458112
        %v573 = vsel %vm572, %v571, %v566
        %v574 = vadd.s32 %v442, 4294967240
        %v575 = vlaneseq
        %v576 = vshrl.u32 %v575, 7
        %v577 = vsub.s32 %v574, %v576
        %v578 = vrot.slane %v523, %v577
        %vm579 = vcmask 523712
        %v580 = vsel %vm579, %v578, %v573
        %v581 = vadd.s32 %v442, 4294967232
        %v582 = vlaneseq
        %v583 = vshrl.u32 %v582, 7
        %v584 = vsub.s32 %v581, %v583
        %v585 = vrot.slane %v524, %v584
        %vm586 = vcmask 589312
        %v587 = vsel %vm586, %v585, %v580
        %v588 = vadd.s32 %v442, 4294967224
        %v589 = vlaneseq
        %v590 = vshrl.u32 %v589, 7
        %v591 = vsub.s32 %v588, %v590
        %v592 = vrot.slane %v525, %v591
        %vm593 = vcmask 654912
        %v594 = vsel %vm593, %v592, %v587
        %v595 = vadd.s32 %v442, 4294967216
        %v596 = vlaneseq
        %v597 = vshrl.u32 %v596, 7
        %v598 = vsub.s32 %v595, %v597
        %v599 = vrot.slane %v526, %v598
        %vm600 = vcmask 720512
        %v601 = vsel %vm600, %v599, %v594
        %v602 = vadd.s32 %v442, 4294967208
        %v603 = vlaneseq
        %v604 = vshrl.u32 %v603, 7
        %v605 = vsub.s32 %v602, %v604
        %v606 = vrot.slane %v527, %v605
        %vm607 = vcmask 786112
        %v608 = vsel %vm607, %v606, %v601
        %vm609 = vcmask 778240
        %610 = vst.msk [vmem:[%s297] sm:$0x1] %vm609, %v608
        %v611 = vld [vmem:[%s307] sm:$0x1]
        %vm612 = vcmp.ne.s32.totalorder %v611, 0
        %v613 = vld [vmem:[%s262] sm:$0x1]
        %v614 = vsel %vm612, %v613, 4294967295
        %615 = vst.msk [vmem:[%s303] sm:$0x1] %vm609, %v614
        %s616 = sand.u32 %s115, 1
        %s617 = scalar_lea.sflag [#allocation4], %s616
        %s618 = sand.u32 %s115, 1
        %s619 = smul.addr %s618, 96
        %s620 = scalar_lea.vmem [#allocation7], %s619
        %s621 = sand.u32 %s29, 1
        %s622 = scalar_lea.sflag [#allocation9], %s621
        %s623 = sand.u32 %s141, 1
        %s624 = scalar_lea.vmem [#allocation8], %s623
        %s625 = sand.u32 %s29, 1
        %s626 = scalar_lea.sflag [#allocation9], %s625
        %s627 = sand.u32 %s167, 1
        %s628 = scalar_lea.vmem [#allocation10], %s627
        // Predicated region
        $region41: #{tpu_custom_call.1} parent=31 // pred_check
          %p629 = pneg %p125
        $region42: #{tpu_custom_call.1} parent=31 // pred_check_branch
          %631 = sbr.rel (%p629) target = $region44
        $region43: #{tpu_custom_call.1} parent=31 // pred_region
          %s632 = smul.u32 12, %s29
          %s634 = ssub.s32 1536, 1536
          %635 = vsyncadd %s617, %s634
          %s636 = smul.addr %s632, 128
          %s637 = scalar_lea.hbm %s3, %s636
          %s638 = sshll.u32 %s620, 4
          %s639 = int_to_ptr.vmem [resolvable:$true] %s638
          %644 = dma.vmem_to_hbm [thread:$0]  %s639, 1536, %s637, %s617, 128, 128, 8
        $region44: #{tpu_custom_call.1} parent=31 // pred_fallthru
          _
        // Predicated region
        $region45: #{tpu_custom_call.1} parent=31 // pred_check
          %p645 = pneg %p151
        $region46: #{tpu_custom_call.1} parent=31 // pred_check_branch
          %647 = sbr.rel (%p645) target = $region48
        $region47: #{tpu_custom_call.1} parent=31 // pred_region
          %s649 = ssub.s32 16, 16
          %650 = vsyncadd %s622, %s649
          %s651 = smul.addr %s29, 16
          %s652 = scalar_lea.hbm %s4, %s651
          %s654 = sshll.u32 %s624, 4
          %s655 = int_to_ptr.vmem [resolvable:$true] %s654
          %657 = dma.vmem_to_hbm [thread:$0]  %s655, 16, %s652, %s622
        $region48: #{tpu_custom_call.1} parent=31 // pred_fallthru
          _
        // Predicated region
        $region49: #{tpu_custom_call.1} parent=31 // pred_check
          %p658 = pneg %p177
        $region50: #{tpu_custom_call.1} parent=31 // pred_check_branch
          %660 = sbr.rel (%p658) target = $region52
        $region51: #{tpu_custom_call.1} parent=31 // pred_region
          %s662 = ssub.s32 16, 16
          %663 = vsyncadd %s626, %s662
          %s664 = smul.addr %s29, 16
          %s665 = scalar_lea.hbm %s5, %s664
          %s667 = sshll.u32 %s628, 4
          %s668 = int_to_ptr.vmem [resolvable:$true] %s667
          %670 = dma.vmem_to_hbm [thread:$0]  %s668, 16, %s665, %s626
        $region52: #{tpu_custom_call.1} parent=31 // pred_fallthru
          _
      $region32: #{tpu_custom_call.1} parent=5 // pred_fallthru
        _
      %p671 = scmp.le.s32.totalorder 2, %s24
      // Predicated region
      $region53: #{tpu_custom_call.1} parent=5 // pred_check
        %p672 = pneg %p671
      $region54: #{tpu_custom_call.1} parent=5 // pred_check_branch
        %674 = sbr.rel (%p672) target = $region56
      $region55: #{tpu_custom_call.1} parent=5 // pred_region
        %s675 = ssub.s32 %s24, 2
        // Predicated region
        $region57: #{tpu_custom_call.1} parent=55 // pred_check
          %p676 = pneg %p131
        $region58: #{tpu_custom_call.1} parent=55 // pred_check_branch
          %678 = sbr.rel (%p676) target = $region60
        $region59: #{tpu_custom_call.1} parent=55 // pred_region
          %s679 = sand.u32 %s116, 1
          %s680 = scalar_lea.sflag [#allocation4], %s679
          %s681 = sand.u32 %s116, 1
          %s682 = smul.addr %s681, 96
          %s683 = scalar_lea.vmem [#allocation7], %s682
          %684 = dma.done %s680, 1536
        $region60: #{tpu_custom_call.1} parent=55 // pred_fallthru
          _
        // Predicated region
        $region61: #{tpu_custom_call.1} parent=55 // pred_check
          %p685 = pneg %p157
        $region62: #{tpu_custom_call.1} parent=55 // pred_check_branch
          %687 = sbr.rel (%p685) target = $region64
        $region63: #{tpu_custom_call.1} parent=55 // pred_region
          %s688 = sand.u32 %s30, 1
          %s689 = scalar_lea.sflag [#allocation9], %s688
          %s690 = sand.u32 %s142, 1
          %s691 = scalar_lea.vmem [#allocation8], %s690
          %692 = dma.done %s689, 16
        $region64: #{tpu_custom_call.1} parent=55 // pred_fallthru
          _
        // Predicated region
        $region65: #{tpu_custom_call.1} parent=55 // pred_check
          %p693 = pneg %p183
        $region66: #{tpu_custom_call.1} parent=55 // pred_check_branch
          %695 = sbr.rel (%p693) target = $region68
        $region67: #{tpu_custom_call.1} parent=55 // pred_region
          %s696 = sand.u32 %s30, 1
          %s697 = scalar_lea.sflag [#allocation9], %s696
          %s698 = sand.u32 %s168, 1
          %s699 = scalar_lea.vmem [#allocation10], %s698
          %700 = dma.done %s697, 16
        $region68: #{tpu_custom_call.1} parent=55 // pred_fallthru
          _
      $region56: #{tpu_custom_call.1} parent=5 // pred_fallthru
        _
    $region6: #{tpu_custom_call.1} parent=1 // loop_footer
      %s28 = sadd.s32 1, %s24
    $region7: #{tpu_custom_call.1} parent=1 // loop_footer_branch
      %23 = sbr.rel target = $region3
    $region8: #{tpu_custom_call.1} parent=1 // loop_exit
      _
    %701 = vsyncpa [#allocation3], 1
    %s702 = scalar_lea.sflag [#allocation3], 1
    %703 = vsyncpa %s702, 1
    %704 = vsyncpa [#allocation6], 1
    %s705 = scalar_lea.sflag [#allocation6], 1
    %706 = vsyncpa %s705, 1
    %707 = vsyncpa [#allocation4], 1
    %s708 = scalar_lea.sflag [#allocation4], 1
    %709 = vsyncpa %s708, 1
    %710 = vsyncpa [#allocation9], 1
    %s711 = scalar_lea.sflag [#allocation9], 1
    %712 = vsyncpa %s711, 1

</llo_original>
